<compile_context>
chip_gen: v7x
topology: tpu7x:2x2x1
jax: 0.10.0
libtpu: 0.0.40
codegen_flags: <defaults>
</compile_context>

<pallas_src>
import jax
import jax.numpy as jnp
from jax.experimental import pallas as pl
from jax.experimental.pallas import tpu as pltpu


def _round_up(x, m):
    return ((x + m - 1) // m) * m


def _linear_kernel(x_ref, w_ref, b_ref, o_ref):
    # x_ref: (TM, K), w_ref: (K, TE) [pre-transposed], b_ref: (1, TE), o_ref: (TM, TE)
    acc = jnp.dot(x_ref[...], w_ref[...], preferred_element_type=jnp.float32)
    o_ref[...] = (acc + b_ref[...].astype(jnp.float32)).astype(o_ref.dtype)


def prepare_params(weight, bias, *, dtype=None):
    """One-time layout prep (do this at init, NOT per call).

    weight: [embedding_dim, memory_dim] (PyTorch nn.Linear layout)
    bias:   [embedding_dim]
    Returns (weight_t [memory_dim, embedding_dim], bias_row [1, embedding_dim]).
    Optionally casts the weight to `dtype` (e.g. bfloat16); bias stays f32
    since it is added to the f32 accumulator.
    """
    w_t = jnp.asarray(weight).T
    if dtype is not None:
        w_t = w_t.astype(dtype)
    b_row = jnp.asarray(bias).reshape(1, -1).astype(jnp.float32)
    return w_t, b_row


def embedding_module_forward(node_memory, weight_t, bias_row, *, row_tile=4096,
                             out_dtype=None, vmem_budget_bytes=32 * 1024 * 1024):
    """y = node_memory @ weight_t + bias (== nn.Linear with pre-transposed weight).

    node_memory: [N, memory_dim]
    weight_t:    [memory_dim, embedding_dim]  (pre-transposed once at init)
    bias_row:    [1, embedding_dim]
    returns:     [N, embedding_dim]
    """
    n, k = node_memory.shape
    kw, e = weight_t.shape
    assert kw == k, "weight must be pre-transposed to [memory_dim, embedding_dim]"
    assert bias_row.shape == (1, e)
    out_dtype = out_dtype if out_dtype is not None else node_memory.dtype

    x_item = jnp.dtype(node_memory.dtype).itemsize
    w_item = jnp.dtype(weight_t.dtype).itemsize
    b_item = jnp.dtype(bias_row.dtype).itemsize
    o_item = jnp.dtype(out_dtype).itemsize

    # ---- E (output-feature) tiling ------------------------------------------
    # Keep the whole weight resident when it (double-buffered) fits in half the
    # budget; otherwise tile E in multiples of 128 lanes so large embedding
    # dims stay inside v7x's 64 MiB VMEM.
    if 2 * k * e * w_item <= vmem_budget_bytes // 2:
        te = e
    else:
        te = (vmem_budget_bytes // 2) // (2 * k * w_item)
        te = max(128, (te // 128) * 128)
        te = min(te, _round_up(e, 128))

    # ---- Row tile -------------------------------------------------------------
    # As large as the remaining budget allows: fewer grid steps (each has ~0.35us
    # fixed cost) and bigger, more efficient DMAs.  Accounting includes the
    # resident (double-buffered) weight + bias.
    resident = 2 * (k * te * w_item + te * b_item)     # weight + bias buffers
    per_row = 2 * (k * x_item + te * o_item)           # double-buffered x + out tiles
    avail = max(vmem_budget_bytes - resident, 8 * per_row)
    tm_cap = max(8, (avail // per_row) // 8 * 8)
    tm = min(row_tile, tm_cap, _round_up(n, 8))
    tm = max(8, (tm // 8) * 8)                         # sublane-aligned

    # Partial last blocks are fine: Pallas clamps the reads and masks the
    # out-of-bounds output rows/columns, so no jnp.pad / final slice is needed.
    grid = (pl.cdiv(n, tm), pl.cdiv(e, te))

    needed = resident + tm * per_row
    # needed <= vmem_budget_bytes (32 MiB) by construction, so the 40 MiB clamp
    # (safe on v7x's 64 MiB physical VMEM) never under-allocates.
    vmem_limit = int(min(40 * 1024 * 1024, max(2 * needed, 16 * 1024 * 1024)))

    cost = pl.CostEstimate(
        flops=2 * n * k * e,
        bytes_accessed=n * k * x_item + k * e * w_item + e * b_item + n * e * o_item,
        transcendentals=0,
    )

    out = pl.pallas_call(
        _linear_kernel,
        out_shape=jax.ShapeDtypeStruct((n, e), out_dtype),
        grid_spec=pltpu.PrefetchScalarGridSpec(
            num_scalar_prefetch=0,
            grid=grid,
            in_specs=[
                # x: one row tile per row step; constant across the (inner) E
                # axis, so Pallas does not re-DMA it when only j changes.
                pl.BlockSpec((tm, k), lambda i, j: (i, 0)),
                # weight [K, TE]: block index constant along the row axis, so
                # it stays resident in VMEM (re-copy elided) across row tiles.
                pl.BlockSpec((k, te), lambda i, j: (0, j)),
                # bias row.
                pl.BlockSpec((1, te), lambda i, j: (0, j)),
            ],
            out_specs=pl.BlockSpec((tm, te), lambda i, j: (i, j)),
        ),
        compiler_params=pltpu.CompilerParams(
            # Row tiles / E tiles are independent -> parallel (2x on v7x
            # megacore, neutral on v5e/v6e).
            dimension_semantics=("parallel", "parallel"),
            vmem_limit_bytes=vmem_limit,
        ),
        cost_estimate=cost,
    )(node_memory, weight_t, bias_row)
    # NOTE: the grid-invariant weight/bias could additionally be marked
    # single-buffered (pipeline_mode=pl.Buffered(1)); their double-buffered
    # footprint is already charged in `resident`, so correctness/VMEM budgeting
    # do not depend on it.
    return out


def init_params(key, memory_dim, embedding_dim):
    """Deterministic nn.Linear-style init: U(-1/sqrt(fan_in), 1/sqrt(fan_in)).

    Returns (weight [E, K], bias [E]) in PyTorch layout (for reference math).
    """
    k_w, k_b = jax.random.split(key)
    bound = 1.0 / (memory_dim ** 0.5)
    weight = jax.random.uniform(
        k_w, (embedding_dim, memory_dim), minval=-bound, maxval=bound,
        dtype=jnp.float32)
    bias = jax.random.uniform(
        k_b, (embedding_dim,), minval=-bound, maxval=bound, dtype=jnp.float32)
    return weight, bias


if __name__ == "__main__":
    key = jax.random.PRNGKey(0)
    k_x, k_p = jax.random.split(key)

    num_nodes = 16
    memory_dim = 32
    embedding_dim = 64

    node_memory = jax.random.normal(k_x, (num_nodes, memory_dim), dtype=jnp.float32)
    weight, bias = init_params(k_p, memory_dim, embedding_dim)

    # One-time layout prep (no per-call HBM pad/transpose passes).
    w_t, b_row = prepare_params(weight, bias)

    out = jax.block_until_ready(embedding_module_forward(node_memory, w_t, b_row))
    ref = node_memory @ weight.T + bias
    assert out.shape == (num_nodes, embedding_dim)
    assert jnp.allclose(out, ref, atol=1e-5, rtol=1e-5)

    # Multi-tile N with a partial last row block (no pre-padding of x).
    big_n = 1037
    big_x = jax.random.normal(jax.random.PRNGKey(1), (big_n, memory_dim),
                              dtype=jnp.float32)
    big_out = jax.block_until_ready(
        embedding_module_forward(big_x, w_t, b_row, row_tile=256))
    big_ref = big_x @ weight.T + bias
    assert big_out.shape == (big_n, embedding_dim)
    assert jnp.allclose(big_out, big_ref, atol=1e-4, rtol=1e-4)

    # bf16 HBM-byte-reduction path (f32 accumulation on the MXU).
    w_t_bf16, b_row_f32 = prepare_params(weight, bias, dtype=jnp.bfloat16)
    bf_out = jax.block_until_ready(
        embedding_module_forward(big_x.astype(jnp.bfloat16), w_t_bf16, b_row_f32,
                                 out_dtype=jnp.float32))
    assert bf_out.shape == (big_n, embedding_dim)
    rel_err = jnp.linalg.norm(bf_out - big_ref) / jnp.linalg.norm(big_ref)
    assert rel_err < 3e-2

    print("KERNEL_OK")
</pallas_src>

<mosaic_0001>
module attributes {stable_mosaic.version = 11 : i64} {
  func.func @_linear_kernel(%arg0: i32, %arg1: i32, %arg2: memref<16x32xf32, #tpu.memory_space<vmem>>, %arg3: memref<32x64xf32, #tpu.memory_space<vmem>>, %arg4: memref<1x64xf32, #tpu.memory_space<vmem>>, %arg5: memref<16x64xf32, #tpu.memory_space<vmem>>) attributes {dimension_semantics = [#tpu.dimension_semantics<parallel>, #tpu.dimension_semantics<parallel>], iteration_bounds = array<i64: 1, 1>, scalar_prefetch = 0 : i64, scratch_operands = 0 : i64, tpu.core_type = #tpu.core_type<tc>, window_params = [{transform_indices = @transform_0, window_bounds = array<i64: 16, 32>}, {transform_indices = @transform_1, window_bounds = array<i64: 32, 64>}, {transform_indices = @transform_2, window_bounds = array<i64: 1, 64>}, {transform_indices = @transform_3, window_bounds = array<i64: 16, 64>}]} {
    %c0 = arith.constant 0 : index
    %c0_0 = arith.constant 0 : index
    %0 = vector.load %arg2[%c0, %c0_0] : memref<16x32xf32, #tpu.memory_space<vmem>>, vector<16x32xf32>
    %c0_1 = arith.constant 0 : index
    %c0_2 = arith.constant 0 : index
    %1 = vector.load %arg3[%c0_1, %c0_2] : memref<32x64xf32, #tpu.memory_space<vmem>>, vector<32x64xf32>
    %cst = arith.constant dense<0.000000e+00> : vector<16x64xf32>
    %2 = tpu.matmul %0, %1, %cst {dimension_numbers = #tpu.dot_dimension_numbers<[1], [0], [0], [1], [0, 0, 1, 1], [], []>} : vector<16x32xf32>, vector<32x64xf32>, vector<16x64xf32> -> vector<16x64xf32>
    %c0_3 = arith.constant 0 : index
    %c0_4 = arith.constant 0 : index
    %3 = vector.load %arg4[%c0_3, %c0_4] : memref<1x64xf32, #tpu.memory_space<vmem>>, vector<1x64xf32>
    %4 = vector.broadcast %3 : vector<1x64xf32> to vector<16x64xf32>
    %5 = arith.addf %2, %4 : vector<16x64xf32>
    %c0_5 = arith.constant 0 : index
    %c0_6 = arith.constant 0 : index
    %6 = vector.load %arg5[%c0_5, %c0_6] : memref<16x64xf32, #tpu.memory_space<vmem>>, vector<16x64xf32>
    tpu.vector_store %arg5[%c0_5, %c0_6], %5 {strides = array<i32>} : memref<16x64xf32, #tpu.memory_space<vmem>>, vector<16x64xf32>,
    return
  }
  func.func @transform_0(%arg0: i32, %arg1: i32) -> (i32, i32) {
    %c0_i32 = arith.constant 0 : i32
    %c0_i32_0 = arith.constant 0 : i32
    return %arg0, %c0_i32 : i32, i32
  }
  func.func @transform_1(%arg0: i32, %arg1: i32) -> (i32, i32) {
    %c0_i32 = arith.constant 0 : i32
    %c0_i32_0 = arith.constant 0 : i32
    return %c0_i32, %arg1 : i32, i32
  }
  func.func @transform_2(%arg0: i32, %arg1: i32) -> (i32, i32) {
    %c0_i32 = arith.constant 0 : i32
    %c0_i32_0 = arith.constant 0 : i32
    return %c0_i32, %arg1 : i32, i32
  }
  func.func @transform_3(%arg0: i32, %arg1: i32) -> (i32, i32) {
    %c0_i32 = arith.constant 0 : i32
    return %arg0, %arg1 : i32, i32
  }
}

</mosaic_0001>

<llo_original>
// kernel: tpu_custom_call.1
$region0: #{tpu_custom_call.1}
  #allocation0 [shape = 'u32[]', space=smem, size = 0x4, offset = 0x4, fixed_abs, tag = 'smem constant byte address 0x4 - core index']
  #allocation1 [shape = 'u32[144,128]{1,0:T(1,128)}', space=vmem, size = 0x12000, scoped, tag = 'internal scratch']
  %s0 = inlined_call_operand.hbm [shape: f32[16,32], index: 0, kind: input, shape index: {}]
  %s1 = inlined_call_operand.hbm [shape: f32[32,64], index: 1, kind: input, shape index: {}]
  %s2 = inlined_call_operand.vmem [shape: f32[1,64], index: 2, kind: input, shape index: {}]
  %s3 = inlined_call_operand.hbm [shape: f32[16,64], index: 3, kind: output, shape index: {}]
  %s4 = sld [smem:[#allocation0]]
  $region30: #{tpu_custom_call.1} parent=0
    _
  %s6 = ssub.s32 1, %s4
  %s7 = scalar_select 0, %s6, %s4
  $region1: #{tpu_custom_call.1} parent=0
    #allocation2 [shape = 'u8[8192]{0}', space=vmem, size = 0x2000, scoped, tag = 'input window, operand 0, single buffered']
    #allocation3 [shape = 's32[1]{0}', space=sflag, size = 0x4, scoped, tag = 'scoped memory for tpu_custom_call.1']
    #allocation4 [shape = 's32[1]{0}', space=sflag, size = 0x4, scoped, tag = 'scoped memory for tpu_custom_call.1']
    #allocation5 [shape = 'u8[16384]{0}', space=vmem, size = 0x4000, scoped, tag = 'input window, operand 1, single buffered']
    #allocation6 [shape = 's32[1]{0}', space=sflag, size = 0x4, scoped, tag = 'scoped memory for tpu_custom_call.1']
    #allocation7 [shape = 'u8[8192]{0}', space=vmem, size = 0x2000, scoped, tag = 'output window, operand 0, single buffered']
    %8 = vsyncpa [#allocation3], 0
    %9 = vsyncpa [#allocation6], 0
    %10 = vsyncpa [#allocation4], 0
    // Predicated region
    $region2: #{tpu_custom_call.1} parent=1 // pred_check
      _
    $region3: #{tpu_custom_call.1} parent=1 // pred_check_branch
      %12 = sbr.rel (0) target = $region5
    $region4: #{tpu_custom_call.1} parent=1 // pred_region
      %s14 = ssub.s32 256, 256
      %15 = vsyncadd [#allocation3], %s14
      %s16 = sshll.u32 [#allocation2], 4
      %s17 = int_to_ptr.vmem [resolvable:$true] %s16
      %22 = dma.hbm_to_vmem [thread:$0]  %s0, 256, %s17, [#allocation3], 128, 128, 8
    $region5: #{tpu_custom_call.1} parent=1 // pred_fallthru
      _
    // Predicated region
    $region6: #{tpu_custom_call.1} parent=1 // pred_check
      _
    $region7: #{tpu_custom_call.1} parent=1 // pred_check_branch
      %24 = sbr.rel (0) target = $region9
    $region8: #{tpu_custom_call.1} parent=1 // pred_region
      %s26 = ssub.s32 512, 512
      %27 = vsyncadd [#allocation6], %s26
      %s28 = sshll.u32 [#allocation5], 4
      %s29 = int_to_ptr.vmem [resolvable:$true] %s28
      %34 = dma.hbm_to_vmem [thread:$0]  %s1, 512, %s29, [#allocation6], 128, 128, 8
    $region9: #{tpu_custom_call.1} parent=1 // pred_fallthru
      _
    // Predicated region
    $region10: #{tpu_custom_call.1} parent=1 // pred_check
      _
    $region11: #{tpu_custom_call.1} parent=1 // pred_check_branch
      %36 = sbr.rel (0) target = $region13
    $region12: #{tpu_custom_call.1} parent=1 // pred_region
      _
    $region13: #{tpu_custom_call.1} parent=1 // pred_fallthru
      _
    // Predicated region
    $region14: #{tpu_custom_call.1} parent=1 // pred_check
      _
    $region15: #{tpu_custom_call.1} parent=1 // pred_check_branch
      %38 = sbr.rel (0) target = $region17
    $region16: #{tpu_custom_call.1} parent=1 // pred_region
      %39 = dma.done [#allocation3], 256
    $region17: #{tpu_custom_call.1} parent=1 // pred_fallthru
      _
    // Predicated region
    $region18: #{tpu_custom_call.1} parent=1 // pred_check
      _
    $region19: #{tpu_custom_call.1} parent=1 // pred_check_branch
      %41 = sbr.rel (0) target = $region21
    $region20: #{tpu_custom_call.1} parent=1 // pred_region
      %42 = dma.done [#allocation6], 512
    $region21: #{tpu_custom_call.1} parent=1 // pred_fallthru
      _
    %v43 = vld [vmem:[#allocation2] sm:$0xff]
    %v44 = vld [vmem:[#allocation2 + $0x8] sm:$0xff]
    %v45 = vld [vmem:[#allocation5] sm:$0xff]
    %v46 = vld [vmem:[#allocation5 + $0x8] sm:$0xff]
    %v47 = vld [vmem:[#allocation5 + $0x10] sm:$0xff]
    %v48 = vld [vmem:[#allocation5 + $0x18] sm:$0xff]
    %v49 = vld [vmem:[%s2] sm:$0x1]
    %v51 = vlaneseq
    %v52 = vshrl.u32 %v51, 7
    %v53 = vsub.s32 0, %v52
    %v54 = vrot.slane %v49, %v53
    %vm56 = vcmask 261120
    %v58 = vsel %vm56, %v43, 0
    %v61 = vsel %vm56, %v44, 0
    %63 = vmatprep.subr.mxu0 0.0
    %64 = vmatpush1.msra.mxu0 %v45
    %65 = vmatprep.subr.mxu0 0.0
    %66 = vmatpush1.msra.mxu0 %v46
    %67 = vmatprep.subr.mxu0 0.0
    %68 = vmatpush1.msra.mxu0 %v47
    %69 = vmatprep.subr.mxu0 0.0
    %70 = vmatpush1.msra.mxu0 %v48
    %71 = vmatprep.subr.mxu0 0.0
    %72 = vmatpush1.msra.mxu0 0.0
    %73 = vmatprep.subr.mxu0 0.0
    %74 = vmatpush1.msra.mxu0 0.0
    %75 = vmatprep.subr.mxu0 0.0
    %76 = vmatpush1.msra.mxu0 0.0
    %77 = vmatprep.subr.mxu0 0.0
    %78 = vmatpush1.msra.mxu0 0.0
    %79 = vmatprep.subr.mxu0 0.0
    %80 = vmatpush1.msra.mxu0 0.0
    %81 = vmatprep.subr.mxu0 0.0
    %82 = vmatpush1.msra.mxu0 0.0
    %83 = vmatprep.subr.mxu0 0.0
    %84 = vmatpush1.msra.mxu0 0.0
    %85 = vmatprep.subr.mxu0 0.0
    %86 = vmatpush1.msra.mxu0 0.0
    %87 = vmatprep.subr.mxu0 0.0
    %88 = vmatpush1.msra.mxu0 0.0
    %89 = vmatprep.subr.mxu0 0.0
    %90 = vmatpush1.msra.mxu0 0.0
    %91 = vmatprep.subr.mxu0 0.0
    %92 = vmatpush1.msra.mxu0 0.0
    %93 = vmatprep.subr.mxu0 0.0
    %94 = vmatpush1.msra.mxu0 0.0
    %95 = vmatprep.subr.mxu0 0.0
    %96 = vmatpush1.msra.mxu0 0.0
    %97 = vmatprep.subr.mxu0 0.0
    %98 = vmatpush1.msra.mxu0 0.0
    %99 = vmatprep.subr.mxu0 0.0
    %100 = vmatpush1.msra.mxu0 0.0
    %101 = vmatprep.subr.mxu0 0.0
    %102 = vmatpush1.msra.mxu0 0.0
    %103 = vmatprep.subr.mxu0 0.0
    %104 = vmatpush1.msra.mxu0 0.0
    %105 = vmatprep.subr.mxu0 0.0
    %106 = vmatpush1.msra.mxu0 0.0
    %107 = vmatprep.subr.mxu0 0.0
    %108 = vmatpush1.msra.mxu0 0.0
    %109 = vmatprep.subr.mxu0 0.0
    %110 = vmatpush1.msra.mxu0 0.0
    %111 = vmatprep.subr.mxu0 0.0
    %112 = vmatpush1.msra.mxu0 0.0
    %113 = vmatprep.subr.mxu0 0.0
    %114 = vmatpush1.msra.mxu0 0.0
    %115 = vmatprep.subr.mxu0 0.0
    %116 = vmatpush1.msra.mxu0 0.0
    %117 = vmatprep.subr.mxu0 0.0
    %118 = vmatpush1.msra.mxu0 0.0
    %119 = vmatprep.subr.mxu0 0.0
    %120 = vmatpush1.msra.mxu0 0.0
    %121 = vmatprep.subr.mxu0 0.0
    %122 = vmatpush1.msra.mxu0 0.0
    %123 = vmatprep.subr.mxu0 0.0
    %124 = vmatpush1.msra.mxu0 0.0
    %125 = vmatprep.subr.mxu0 0.0
    %126 = vmatpush1.msra.mxu0 0.0
    %127 = vmatprep.mubr.f32.mxu0 0.0
    %128 = vmatmul.mubr.f32.gmra.mrb[0].mxu0 %v58
    %v129 = vpop.f32.mrb[0].mxu0
    %v130 = vadd.f32 %v54, %v129
    %v131 = vpop.f32.mrb[0].mxu0
    %132 = vmatprep.mubr.f32.mxu0 0.0
    %133 = vmatmul.mubr.f32.gmra.mrb[0].mxu0 %v61
    %v134 = vpop.f32.mrb[0].mxu0
    %v135 = vadd.f32 %v54, %v134
    %v136 = vpop.f32.mrb[0].mxu0
    %137 = vdwg.mxu0
    %vm138 = vcmask 523264
    %139 = vst.msk [vmem:[#allocation7] sm:$0xff] %vm138, %v130
    %140 = vst.msk [vmem:[#allocation7 + $0x8] sm:$0xff] %vm138, %v135
    // Predicated region
    $region22: #{tpu_custom_call.1} parent=1 // pred_check
      _
    $region23: #{tpu_custom_call.1} parent=1 // pred_check_branch
      %142 = sbr.rel (0) target = $region25
    $region24: #{tpu_custom_call.1} parent=1 // pred_region
      %s144 = ssub.s32 256, 256
      %145 = vsyncadd [#allocation4], %s144
      %s146 = sshll.u32 [#allocation7], 4
      %s147 = int_to_ptr.vmem [resolvable:$true] %s146
      %152 = dma.vmem_to_hbm [thread:$0]  %s147, 256, %s3, [#allocation4], 128, 128, 8
    $region25: #{tpu_custom_call.1} parent=1 // pred_fallthru
      _
    // Predicated region
    $region26: #{tpu_custom_call.1} parent=1 // pred_check
      _
    $region27: #{tpu_custom_call.1} parent=1 // pred_check_branch
      %154 = sbr.rel (0) target = $region29
    $region28: #{tpu_custom_call.1} parent=1 // pred_region
      %155 = dma.done [#allocation4], 256
    $region29: #{tpu_custom_call.1} parent=1 // pred_fallthru
      _
    %156 = vsyncpa [#allocation3], 1
    %157 = vsyncpa [#allocation6], 1
    %158 = vsyncpa [#allocation4], 1

</llo_original>
